<compile_context>
chip_gen: v7x
topology: tpu7x:2x2x1
jax: 0.10.0
libtpu: 0.0.40
codegen_flags: <defaults>
</compile_context>

<pallas_src>
import functools

import jax
import jax.numpy as jnp
from jax import lax
from jax.experimental import pallas as pl
from jax.experimental.pallas import tpu as pltpu


def _round_up(a, m):
    return ((a + m - 1) // m) * m


def _fcu_down_kernel(x_ref, w_ref, b_ref, g_ref, be_ref, o_ref, *,
                     eps, approximate_gelu):
    # x_ref:  (Tt, c1)  bf16 pooled tokens (one tile)
    # w_ref:  (c1, c2)  bf16 1x1-conv weight (pre-transposed)
    # b_ref:  (1, c2)   f32 conv bias
    # g_ref:  (1, c2)   f32 LayerNorm gamma
    # be_ref: (1, c2)   f32 LayerNorm beta
    # o_ref:  (Tt, c2)  output tile (row-0 aligned, single full-block store)

    # 1x1 conv == per-token linear projection: bf16 MXU matmul, f32 accumulate.
    y = jnp.dot(x_ref[...], w_ref[...],
                preferred_element_type=jnp.float32) + b_ref[...]

    # LayerNorm over channels, one-pass statistics (two independent XLU
    # reductions; no (y - mu) temporary), all in f32.
    inv_c2 = 1.0 / y.shape[-1]
    mu = jnp.sum(y, axis=-1, keepdims=True) * inv_c2
    ms = jnp.sum(y * y, axis=-1, keepdims=True) * inv_c2
    var = jnp.maximum(ms - mu * mu, 0.0)
    yn = (y - mu) * lax.rsqrt(var + eps)
    yn = yn * g_ref[...] + be_ref[...]

    if approximate_gelu:
        # tanh-approx GELU: transcendental goes to the (otherwise idle) EUP
        # instead of the erf polynomial on the saturating VALU slot.
        c = 0.7978845608028654  # sqrt(2/pi)
        act = 0.5 * yn * (1.0 + jnp.tanh(c * (yn + 0.044715 * yn * yn * yn)))
    else:
        # Exact erf GELU, matching torch.nn.GELU() default.
        act = 0.5 * yn * (1.0 + lax.erf(yn * (2.0 ** -0.5)))

    o_ref[...] = act.astype(o_ref.dtype)


@functools.partial(
    jax.jit,
    static_argnames=("dw_stride", "eps", "token_tile",
                     "approximate_gelu", "out_dtype"))
def fcu_down(x, x_t, conv_w, conv_b, ln_gamma, ln_beta, dw_stride,
             eps=1e-5, token_tile=512, approximate_gelu=False,
             out_dtype=jnp.float32):
    """FCUDown forward.

    x:       (B, c1, H, W) NCHW input.
    x_t:     (B, T, c2) transformer tokens (only token 0 is used).
    conv_w:  PyTorch Conv2d weight, (c2, c1, 1, 1) or (c2, c1).
    conv_b, ln_gamma, ln_beta: (c2,).
    Returns (B, 1 + (H//s)*(W//s), c2) in `out_dtype` (default float32).
    """
    B, c1, H, W = x.shape
    s = dw_stride
    c2 = conv_w.shape[0]
    w2d = conv_w.reshape(c2, c1)                          # torch (c2, c1) layout

    Hp, Wp = H // s, W // s
    Np = Hp * Wp
    total = B * Np

    # --- glue: average-pool FIRST (commutes with the 1x1 conv) --------------
    # AvgPool2d(s, s) silently drops remainder pixels -> crop, pool in NCHW,
    # cast to bf16 BEFORE the channels-last transpose so the XLA transpose
    # moves half the bytes.  All of this fuses under the same jit as the
    # pallas_call.
    xc = x[:, :, :Hp * s, :Wp * s].astype(jnp.float32)
    pooled = xc.reshape(B, c1, Hp, s, Wp, s).mean(axis=(3, 5))     # (B, c1, Hp, Wp)
    pooled = pooled.reshape(B, c1, Np).astype(jnp.bfloat16)
    tokens = jnp.transpose(pooled, (0, 2, 1)).reshape(total, c1)   # (B*Np, c1)

    # --- token tiling ---------------------------------------------------------
    # >= 2 grid steps so Pallas can prefetch tile i+1 / write back tile i-1
    # while computing tile i; even step count so the "parallel" axis splits
    # cleanly across v7x's two TensorCores.  Tile rounded to sublane multiple.
    n_steps = max(2, pl.cdiv(total, token_tile))
    if n_steps % 2:
        n_steps += 1
    tile = _round_up(pl.cdiv(total, n_steps), 8)
    n_tiles = pl.cdiv(total, tile)
    # No explicit padding: Pallas clips the ragged last block; tail rows are
    # per-row garbage that never gets written back.

    kernel = functools.partial(_fcu_down_kernel, eps=eps,
                               approximate_gelu=approximate_gelu)

    y = pl.pallas_call(
        kernel,
        out_shape=jax.ShapeDtypeStruct((total, c2), out_dtype),
        grid=(n_tiles,),
        in_specs=[
            pl.BlockSpec((tile, c1), lambda i: (i, 0)),
            pl.BlockSpec((c1, c2), lambda i: (0, 0)),
            pl.BlockSpec((1, c2), lambda i: (0, 0)),
            pl.BlockSpec((1, c2), lambda i: (0, 0)),
            pl.BlockSpec((1, c2), lambda i: (0, 0)),
        ],
        out_specs=pl.BlockSpec((tile, c2), lambda i: (i, 0)),
        compiler_params=pltpu.CompilerParams(
            dimension_semantics=("parallel",)),
    )(tokens,
      jnp.transpose(w2d).astype(jnp.bfloat16),            # (c1, c2) bf16
      conv_b.reshape(1, c2).astype(jnp.float32),
      ln_gamma.reshape(1, c2).astype(jnp.float32),
      ln_beta.reshape(1, c2).astype(jnp.float32))

    y = y.reshape(B, Np, c2)
    # cls-token concat kept outside so the kernel's output stores stay
    # full-block / row-0 aligned (no masked sublane-offset-1 stores).
    return jnp.concatenate([x_t[:, :1, :].astype(out_dtype), y], axis=1)


def _reference(x, x_t, conv_w, conv_b, ln_gamma, ln_beta, dw_stride, eps=1e-5):
    """Pure-JAX f32 reference mirroring the PyTorch forward exactly."""
    B, c1, H, W = x.shape
    c2 = conv_w.shape[0]
    s = dw_stride
    w2d = conv_w.reshape(c2, c1)
    y = jnp.einsum('bchw,dc->bdhw', x, w2d) + conv_b[None, :, None, None]
    Hp, Wp = H // s, W // s
    y = y[:, :, :Hp * s, :Wp * s].reshape(B, c2, Hp, s, Wp, s).mean(axis=(3, 5))
    y = y.reshape(B, c2, -1).transpose(0, 2, 1)            # (B, Np, c2)
    mu = y.mean(-1, keepdims=True)
    var = ((y - mu) ** 2).mean(-1, keepdims=True)
    y = (y - mu) / jnp.sqrt(var + eps) * ln_gamma + ln_beta
    y = 0.5 * y * (1.0 + lax.erf(y / jnp.sqrt(2.0)))
    return jnp.concatenate([x_t[:, :1, :], y], axis=1)


def _path_matched_reference(x, x_t, conv_w, conv_b, ln_gamma, ln_beta,
                            dw_stride, eps=1e-5):
    """Same math path as the kernel (pool-first, bf16 matmul operands,
    one-pass LN statistics, exact erf GELU)."""
    B, c1, H, W = x.shape
    c2 = conv_w.shape[0]
    s = dw_stride
    Hp, Wp = H // s, W // s
    pooled = (x[:, :, :Hp * s, :Wp * s].astype(jnp.float32)
              .reshape(B, c1, Hp, s, Wp, s).mean(axis=(3, 5)))
    t = jnp.transpose(pooled.reshape(B, c1, Hp * Wp).astype(jnp.bfloat16),
                      (0, 2, 1))
    w = jnp.transpose(conv_w.reshape(c2, c1)).astype(jnp.bfloat16)
    y = jnp.einsum('bnc,cd->bnd', t, w,
                   preferred_element_type=jnp.float32) + conv_b
    mu = y.mean(-1, keepdims=True)
    var = jnp.maximum((y * y).mean(-1, keepdims=True) - mu * mu, 0.0)
    y = (y - mu) * lax.rsqrt(var + eps) * ln_gamma + ln_beta
    y = 0.5 * y * (1.0 + lax.erf(y * (2.0 ** -0.5)))
    return jnp.concatenate([x_t[:, :1, :].astype(jnp.float32), y], axis=1)


if __name__ == "__main__":
    key = jax.random.PRNGKey(0)
    B, c1, c2, H, W, s = 2, 4, 32, 16, 16, 4
    Np = (H // s) * (W // s)
    T = 5  # transformer tokens in x_t (only token 0 is used)

    kx, kt, kw, kb = jax.random.split(key, 4)
    x = jax.random.normal(kx, (B, c1, H, W), jnp.float32)
    x_t = jax.random.normal(kt, (B, T, c2), jnp.float32)
    conv_w = jax.random.normal(kw, (c2, c1, 1, 1), jnp.float32) * 0.1  # torch layout
    conv_b = jax.random.normal(kb, (c2,), jnp.float32) * 0.1
    ln_gamma = jnp.ones((c2,), jnp.float32)                            # torch LN defaults
    ln_beta = jnp.zeros((c2,), jnp.float32)

    out = fcu_down(x, x_t, conv_w, conv_b, ln_gamma, ln_beta, dw_stride=s)
    out = jax.block_until_ready(out)
    assert out.shape == (B, 1 + Np, c2), out.shape

    # Tight check against a reference that follows the kernel's exact math
    # path (pool-first, bf16 MXU operands, f32 one-pass LN, erf GELU).
    ref_path = _path_matched_reference(x, x_t, conv_w, conv_b,
                                       ln_gamma, ln_beta, s)
    assert jnp.allclose(out, ref_path, rtol=1e-3, atol=1e-3), \
        "mismatch vs path-matched reference"

    # Loose check against the exact-f32 PyTorch-semantics mirror; the only
    # difference is bf16 quantization of the matmul operands.
    ref = _reference(x, x_t, conv_w, conv_b, ln_gamma, ln_beta, s)
    assert jnp.allclose(out, ref, rtol=5e-2, atol=5e-2), \
        "mismatch vs f32 reference"

    print("KERNEL_OK")
</pallas_src>

<mosaic_0001>
module attributes {stable_mosaic.version = 11 : i64} {
  func.func @_fcu_down_kernel(%arg0: i32, %arg1: memref<16x4xbf16, #tpu.memory_space<vmem>>, %arg2: memref<4x32xbf16, #tpu.memory_space<vmem>>, %arg3: memref<1x32xf32, #tpu.memory_space<vmem>>, %arg4: memref<1x32xf32, #tpu.memory_space<vmem>>, %arg5: memref<1x32xf32, #tpu.memory_space<vmem>>, %arg6: memref<16x32xf32, #tpu.memory_space<vmem>>) attributes {dimension_semantics = [#tpu.dimension_semantics<parallel>], iteration_bounds = array<i64: 2>, scalar_prefetch = 0 : i64, scratch_operands = 0 : i64, tpu.core_type = #tpu.core_type<tc>, window_params = [{transform_indices = @transform_0, window_bounds = array<i64: 16, 4>}, {pipeline_mode = #tpu.pipeline_mode<synchronous>, transform_indices = @transform_1, window_bounds = array<i64: 4, 32>}, {pipeline_mode = #tpu.pipeline_mode<synchronous>, transform_indices = @transform_2, window_bounds = array<i64: 1, 32>}, {pipeline_mode = #tpu.pipeline_mode<synchronous>, transform_indices = @transform_3, window_bounds = array<i64: 1, 32>}, {pipeline_mode = #tpu.pipeline_mode<synchronous>, transform_indices = @transform_4, window_bounds = array<i64: 1, 32>}, {transform_indices = @transform_5, window_bounds = array<i64: 16, 32>}]} {
    %c0 = arith.constant 0 : index
    %c0_0 = arith.constant 0 : index
    %0 = vector.load %arg1[%c0, %c0_0] : memref<16x4xbf16, #tpu.memory_space<vmem>>, vector<16x4xbf16>
    %c0_1 = arith.constant 0 : index
    %c0_2 = arith.constant 0 : index
    %1 = vector.load %arg2[%c0_1, %c0_2] : memref<4x32xbf16, #tpu.memory_space<vmem>>, vector<4x32xbf16>
    %cst = arith.constant dense<0.000000e+00> : vector<16x32xf32>
    %2 = tpu.matmul %0, %1, %cst {dimension_numbers = #tpu.dot_dimension_numbers<[1], [0], [0], [1], [0, 0, 1, 1], [], []>} : vector<16x4xbf16>, vector<4x32xbf16>, vector<16x32xf32> -> vector<16x32xf32>
    %c0_3 = arith.constant 0 : index
    %c0_4 = arith.constant 0 : index
    %3 = vector.load %arg3[%c0_3, %c0_4] : memref<1x32xf32, #tpu.memory_space<vmem>>, vector<1x32xf32>
    %4 = vector.broadcast %3 : vector<1x32xf32> to vector<16x32xf32>
    %5 = arith.addf %2, %4 : vector<16x32xf32>
    %cst_5 = arith.constant dense<0.000000e+00> : vector<16xf32>
    %6 = vector.multi_reduction <add>, %5, %cst_5 [1] : vector<16x32xf32> to vector<16xf32>
    %7 = vector.shape_cast %6 : vector<16xf32> to vector<16x1xf32>
    %cst_6 = arith.constant 3.125000e-02 : f32
    %8 = vector.broadcast %cst_6 : f32 to vector<16x1xf32>
    %9 = arith.mulf %7, %8 : vector<16x1xf32>
    %10 = arith.mulf %5, %5 : vector<16x32xf32>
    %cst_7 = arith.constant dense<0.000000e+00> : vector<16xf32>
    %11 = vector.multi_reduction <add>, %10, %cst_7 [1] : vector<16x32xf32> to vector<16xf32>
    %12 = vector.shape_cast %11 : vector<16xf32> to vector<16x1xf32>
    %cst_8 = arith.constant 3.125000e-02 : f32
    %13 = vector.broadcast %cst_8 : f32 to vector<16x1xf32>
    %14 = arith.mulf %12, %13 : vector<16x1xf32>
    %15 = arith.mulf %9, %9 : vector<16x1xf32>
    %16 = arith.subf %14, %15 : vector<16x1xf32>
    %cst_9 = arith.constant 0.000000e+00 : f32
    %17 = vector.broadcast %cst_9 : f32 to vector<16x1xf32>
    %18 = arith.maximumf %16, %17 : vector<16x1xf32>
    %19 = vector.broadcast %9 : vector<16x1xf32> to vector<16x32xf32>
    %20 = arith.subf %5, %19 : vector<16x32xf32>
    %cst_10 = arith.constant 9.99999974E-6 : f32
    %21 = vector.broadcast %cst_10 : f32 to vector<16x1xf32>
    %22 = arith.addf %18, %21 : vector<16x1xf32>
    %23 = math.rsqrt %22 : vector<16x1xf32>
    %24 = vector.broadcast %23 : vector<16x1xf32> to vector<16x32xf32>
    %25 = arith.mulf %20, %24 : vector<16x32xf32>
    %c0_11 = arith.constant 0 : index
    %c0_12 = arith.constant 0 : index
    %26 = vector.load %arg4[%c0_11, %c0_12] : memref<1x32xf32, #tpu.memory_space<vmem>>, vector<1x32xf32>
    %27 = vector.broadcast %26 : vector<1x32xf32> to vector<16x32xf32>
    %28 = arith.mulf %25, %27 : vector<16x32xf32>
    %c0_13 = arith.constant 0 : index
    %c0_14 = arith.constant 0 : index
    %29 = vector.load %arg5[%c0_13, %c0_14] : memref<1x32xf32, #tpu.memory_space<vmem>>, vector<1x32xf32>
    %30 = vector.broadcast %29 : vector<1x32xf32> to vector<16x32xf32>
    %31 = arith.addf %28, %30 : vector<16x32xf32>
    %cst_15 = arith.constant 5.000000e-01 : f32
    %32 = vector.broadcast %cst_15 : f32 to vector<16x32xf32>
    %33 = arith.mulf %32, %31 : vector<16x32xf32>
    %cst_16 = arith.constant 0.707106769 : f32
    %34 = vector.broadcast %cst_16 : f32 to vector<16x32xf32>
    %35 = arith.mulf %31, %34 : vector<16x32xf32>
    %36 = math.erf %35 : vector<16x32xf32>
    %cst_17 = arith.constant 1.000000e+00 : f32
    %37 = vector.broadcast %cst_17 : f32 to vector<16x32xf32>
    %38 = arith.addf %37, %36 : vector<16x32xf32>
    %39 = arith.mulf %33, %38 : vector<16x32xf32>
    %c0_18 = arith.constant 0 : index
    %c0_19 = arith.constant 0 : index
    %40 = vector.load %arg6[%c0_18, %c0_19] : memref<16x32xf32, #tpu.memory_space<vmem>>, vector<16x32xf32>
    tpu.vector_store %arg6[%c0_18, %c0_19], %39 {strides = array<i32>} : memref<16x32xf32, #tpu.memory_space<vmem>>, vector<16x32xf32>,
    return
  }
  func.func @transform_0(%arg0: i32) -> (i32, i32) {
    %c0_i32 = arith.constant 0 : i32
    %c0_i32_0 = arith.constant 0 : i32
    return %arg0, %c0_i32 : i32, i32
  }
  func.func @transform_1(%arg0: i32) -> (i32, i32) {
    %c0_i32 = arith.constant 0 : i32
    %c0_i32_0 = arith.constant 0 : i32
    %c0_i32_1 = arith.constant 0 : i32
    return %c0_i32, %c0_i32_0 : i32, i32
  }
  func.func @transform_2(%arg0: i32) -> (i32, i32) {
    %c0_i32 = arith.constant 0 : i32
    %c0_i32_0 = arith.constant 0 : i32
    %c0_i32_1 = arith.constant 0 : i32
    return %c0_i32, %c0_i32_0 : i32, i32
  }
  func.func @transform_3(%arg0: i32) -> (i32, i32) {
    %c0_i32 = arith.constant 0 : i32
    %c0_i32_0 = arith.constant 0 : i32
    %c0_i32_1 = arith.constant 0 : i32
    return %c0_i32, %c0_i32_0 : i32, i32
  }
  func.func @transform_4(%arg0: i32) -> (i32, i32) {
    %c0_i32 = arith.constant 0 : i32
    %c0_i32_0 = arith.constant 0 : i32
    %c0_i32_1 = arith.constant 0 : i32
    return %c0_i32, %c0_i32_0 : i32, i32
  }
  func.func @transform_5(%arg0: i32) -> (i32, i32) {
    %c0_i32 = arith.constant 0 : i32
    %c0_i32_0 = arith.constant 0 : i32
    return %arg0, %c0_i32 : i32, i32
  }
}

</mosaic_0001>

<llo_original>
// kernel: fcu_down.1
$region0: #{fcu_down.1}
  #allocation0 [shape = 'u32[]', space=smem, size = 0x4, offset = 0x4, fixed_abs, tag = 'smem constant byte address 0x4 - core index']
  #allocation1 [shape = 'u32[144,128]{1,0:T(1,128)}', space=vmem, size = 0x12000, scoped, tag = 'internal scratch']
  %s0 = inlined_call_operand.vmem [shape: bf16[32,4], index: 0, kind: input, shape index: {}]
  %s1 = inlined_call_operand.vmem [shape: bf16[4,32], index: 1, kind: input, shape index: {}]
  %s2 = inlined_call_operand.vmem [shape: f32[1,32], index: 2, kind: input, shape index: {}]
  %s3 = inlined_call_operand.vmem [shape: f32[1,32], index: 3, kind: input, shape index: {}]
  %s4 = inlined_call_operand.vmem [shape: f32[1,32], index: 4, kind: input, shape index: {}]
  %s5 = inlined_call_operand.vmem [shape: f32[32,32], index: 5, kind: output, shape index: {}]
  %s6 = sld [smem:[#allocation0]]
  $region53: #{fcu_down.1} parent=0
    _
  %s8 = ssub.s32 1, %s6
  %s9 = scalar_select 0, %s8, %s6
  loop: start=0, step=1, limit=4
  $region2: #{fcu_down.1} parent=0 // loop_pre_header
    _
  $region3: #{fcu_down.1} parent=0 // loop_header
    %s11 = sphi 0, %s15
    %p12 = scmp.ge.s32.totalorder %s11, 4
    %s21 = sphi 0, %s23
    %s24 = sphi 0, %s21
    %s25 = sphi 0, %s24
    %s41 = sphi 0, %s25
    %s45 = sphi 0, %s45
    %s47 = sphi 0, %s45
    %s48 = sphi 0, %s47
    %s62 = sphi 0, %s48
    %s66 = sphi 0, %s66
    %s68 = sphi 0, %s66
    %s69 = sphi 0, %s68
    %s83 = sphi 0, %s69
    %s87 = sphi 0, %s87
    %s89 = sphi 0, %s87
    %s90 = sphi 0, %s89
    %s104 = sphi 0, %s90
    %s108 = sphi 0, %s108
    %s110 = sphi 0, %s108
    %s111 = sphi 0, %s110
    %s125 = sphi 0, %s111
    %s131 = sphi 0, %s133
    %s134 = sphi 0, %s131
    %s135 = sphi 0, %s134
    %s151 = sphi 0, %s135
  $region4: #{fcu_down.1} parent=0 // loop_header_branch
    %14 = sbr.rel (%p12) target = $region8
  $region5: #{fcu_down.1} parent=0 // loop_body
    %s16 = ssub.s32 %s11, 1
    %s17 = ssub.s32 %s11, 2
    %s18 = sadd.s32 %s11, 1
    %s19 = ssub.s32 %s11, %s18
    %p20 = scmp.eq.s32.totalorder %s19, 0
    %s22 = sadd.s32 %s21, 1
    %s23 = scalar_select %p20, %s21, %s22
    %p26 = pneg %p20
    %p27 = scmp.eq.s32.totalorder %s11, 1
    %p28 = por %p26, %p27
    %p29 = scmp.ne.s32.totalorder %s21, %s24
    %p30 = scmp.eq.s32.totalorder %s11, 0
    %p31 = por %p29, %p30
    %p32 = scmp.ne.s32.totalorder %s21, %s24
    %p33 = scmp.eq.s32.totalorder %s16, 1
    %p34 = por %p32, %p33
    %p35 = scmp.ne.s32.totalorder %s24, %s25
    %p36 = scmp.eq.s32.totalorder %s16, 0
    %p37 = por %p35, %p36
    %p38 = scmp.ne.s32.totalorder %s24, %s25
    %p39 = scmp.eq.s32.totalorder %s17, 1
    %p40 = por %p38, %p39
    %p42 = scmp.ne.s32.totalorder %s25, %s41
    %p43 = scmp.eq.s32.totalorder %s17, 0
    %p44 = por %p42, %p43
    %s46 = sadd.s32 %s45, 1
    %p49 = scmp.eq.s32.totalorder %s11, 1
    %p50 = scmp.ne.s32.totalorder %s45, %s47
    %p51 = scmp.eq.s32.totalorder %s11, 0
    %p52 = por %p50, %p51
    %p53 = scmp.ne.s32.totalorder %s45, %s47
    %p54 = scmp.eq.s32.totalorder %s16, 1
    %p55 = por %p53, %p54
    %p56 = scmp.ne.s32.totalorder %s47, %s48
    %p57 = scmp.eq.s32.totalorder %s16, 0
    %p58 = por %p56, %p57
    %p59 = scmp.ne.s32.totalorder %s47, %s48
    %p60 = scmp.eq.s32.totalorder %s17, 1
    %p61 = por %p59, %p60
    %p63 = scmp.ne.s32.totalorder %s48, %s62
    %p64 = scmp.eq.s32.totalorder %s17, 0
    %p65 = por %p63, %p64
    %s67 = sadd.s32 %s66, 1
    %p70 = scmp.eq.s32.totalorder %s11, 1
    %p71 = scmp.ne.s32.totalorder %s66, %s68
    %p72 = scmp.eq.s32.totalorder %s11, 0
    %p73 = por %p71, %p72
    %p74 = scmp.ne.s32.totalorder %s66, %s68
    %p75 = scmp.eq.s32.totalorder %s16, 1
    %p76 = por %p74, %p75
    %p77 = scmp.ne.s32.totalorder %s68, %s69
    %p78 = scmp.eq.s32.totalorder %s16, 0
    %p79 = por %p77, %p78
    %p80 = scmp.ne.s32.totalorder %s68, %s69
    %p81 = scmp.eq.s32.totalorder %s17, 1
    %p82 = por %p80, %p81
    %p84 = scmp.ne.s32.totalorder %s69, %s83
    %p85 = scmp.eq.s32.totalorder %s17, 0
    %p86 = por %p84, %p85
    %s88 = sadd.s32 %s87, 1
    %p91 = scmp.eq.s32.totalorder %s11, 1
    %p92 = scmp.ne.s32.totalorder %s87, %s89
    %p93 = scmp.eq.s32.totalorder %s11, 0
    %p94 = por %p92, %p93
    %p95 = scmp.ne.s32.totalorder %s87, %s89
    %p96 = scmp.eq.s32.totalorder %s16, 1
    %p97 = por %p95, %p96
    %p98 = scmp.ne.s32.totalorder %s89, %s90
    %p99 = scmp.eq.s32.totalorder %s16, 0
    %p100 = por %p98, %p99
    %p101 = scmp.ne.s32.totalorder %s89, %s90
    %p102 = scmp.eq.s32.totalorder %s17, 1
    %p103 = por %p101, %p102
    %p105 = scmp.ne.s32.totalorder %s90, %s104
    %p106 = scmp.eq.s32.totalorder %s17, 0
    %p107 = por %p105, %p106
    %s109 = sadd.s32 %s108, 1
    %p112 = scmp.eq.s32.totalorder %s11, 1
    %p113 = scmp.ne.s32.totalorder %s108, %s110
    %p114 = scmp.eq.s32.totalorder %s11, 0
    %p115 = por %p113, %p114
    %p116 = scmp.ne.s32.totalorder %s108, %s110
    %p117 = scmp.eq.s32.totalorder %s16, 1
    %p118 = por %p116, %p117
    %p119 = scmp.ne.s32.totalorder %s110, %s111
    %p120 = scmp.eq.s32.totalorder %s16, 0
    %p121 = por %p119, %p120
    %p122 = scmp.ne.s32.totalorder %s110, %s111
    %p123 = scmp.eq.s32.totalorder %s17, 1
    %p124 = por %p122, %p123
    %p126 = scmp.ne.s32.totalorder %s111, %s125
    %p127 = scmp.eq.s32.totalorder %s17, 0
    %p128 = por %p126, %p127
    %s129 = ssub.s32 %s11, %s18
    %p130 = scmp.eq.s32.totalorder %s129, 0
    %s132 = sadd.s32 %s131, 1
    %s133 = scalar_select %p130, %s131, %s132
    %p136 = pneg %p130
    %p137 = scmp.eq.s32.totalorder %s11, 1
    %p138 = por %p136, %p137
    %p139 = scmp.ne.s32.totalorder %s131, %s134
    %p140 = scmp.eq.s32.totalorder %s11, 0
    %p141 = por %p139, %p140
    %p142 = scmp.ne.s32.totalorder %s131, %s134
    %p143 = scmp.eq.s32.totalorder %s16, 1
    %p144 = por %p142, %p143
    %p145 = scmp.ne.s32.totalorder %s134, %s135
    %p146 = scmp.eq.s32.totalorder %s16, 0
    %p147 = por %p145, %p146
    %p148 = scmp.ne.s32.totalorder %s134, %s135
    %p149 = scmp.eq.s32.totalorder %s17, 1
    %p150 = por %p148, %p149
    %p152 = scmp.ne.s32.totalorder %s135, %s151
    %p153 = scmp.eq.s32.totalorder %s17, 0
    %p154 = por %p152, %p153
    %p155 = scmp.le.s32.totalorder 1, %s11
    %p156 = scmp.lt.s32.totalorder %s11, 3
    %p157 = pnand %p155, %p156
    %p158 = pneg %p157
    // Predicated region
    $region9: #{fcu_down.1} parent=5 // pred_check
      _
    $region10: #{fcu_down.1} parent=5 // pred_check_branch
      %160 = sbr.rel (%p157) target = $region12
    $region11: #{fcu_down.1} parent=5 // pred_region
      %s161 = ssub.s32 %s11, 1
      // Predicated region
      $region13: #{fcu_down.1} parent=11 // pred_check
        %p162 = pneg %p58
      $region14: #{fcu_down.1} parent=11 // pred_check_branch
        %164 = sbr.rel (%p162) target = $region16
      $region15: #{fcu_down.1} parent=11 // pred_region
        _
      $region16: #{fcu_down.1} parent=11 // pred_fallthru
        _
      // Predicated region
      $region17: #{fcu_down.1} parent=11 // pred_check
        %p165 = pneg %p79
      $region18: #{fcu_down.1} parent=11 // pred_check_branch
        %167 = sbr.rel (%p165) target = $region20
      $region19: #{fcu_down.1} parent=11 // pred_region
        _
      $region20: #{fcu_down.1} parent=11 // pred_fallthru
        _
      // Predicated region
      $region21: #{fcu_down.1} parent=11 // pred_check
        %p168 = pneg %p100
      $region22: #{fcu_down.1} parent=11 // pred_check_branch
        %170 = sbr.rel (%p168) target = $region24
      $region23: #{fcu_down.1} parent=11 // pred_region
        _
      $region24: #{fcu_down.1} parent=11 // pred_fallthru
        _
      // Predicated region
      $region25: #{fcu_down.1} parent=11 // pred_check
        %p171 = pneg %p121
      $region26: #{fcu_down.1} parent=11 // pred_check_branch
        %173 = sbr.rel (%p171) target = $region28
      $region27: #{fcu_down.1} parent=11 // pred_region
        _
      $region28: #{fcu_down.1} parent=11 // pred_fallthru
        _
    $region12: #{fcu_down.1} parent=5 // pred_fallthru
      _
    %p174 = scmp.lt.s32.totalorder %s11, 2
    // Predicated region
    $region29: #{fcu_down.1} parent=5 // pred_check
      %p175 = pneg %p174
    $region30: #{fcu_down.1} parent=5 // pred_check_branch
      %177 = sbr.rel (%p175) target = $region32
    $region31: #{fcu_down.1} parent=5 // pred_region
      // Predicated region
      $region33: #{fcu_down.1} parent=31 // pred_check
        %p178 = pneg %p31
      $region34: #{fcu_down.1} parent=31 // pred_check_branch
        %180 = sbr.rel (%p178) target = $region36
      $region35: #{fcu_down.1} parent=31 // pred_region
        %s181 = smul.u32 2, %s11
        %p182 = scmp.lt.s32.totalorder %s181, 3
        %s183 = scalar_select %p182, %s181, 3
        %s184 = smul.addr %s183, 4
        %s185 = scalar_lea.vmem %s0, %s184
        %s186 = smul.u32 2, %s11
      $region36: #{fcu_down.1} parent=31 // pred_fallthru
        _
    $region32: #{fcu_down.1} parent=5 // pred_fallthru
      _
    %p187 = scmp.le.s32.totalorder 1, %s11
    %p188 = scmp.lt.s32.totalorder %s11, 3
    %p189 = pnand %p187, %p188
    %p190 = pneg %p189
    // Predicated region
    $region37: #{fcu_down.1} parent=5 // pred_check
      _
    $region38: #{fcu_down.1} parent=5 // pred_check_branch
      %192 = sbr.rel (%p189) target = $region40
    $region39: #{fcu_down.1} parent=5 // pred_region
      %s193 = ssub.s32 %s11, 1
      %s194 = smul.u32 2, %s16
      %p195 = scmp.lt.s32.totalorder %s194, 3
      %s196 = scalar_select %p195, %s194, 3
      %s197 = smul.addr %s196, 4
      %s198 = scalar_lea.vmem %s0, %s197
      %p199 = pneg %p37
      %p200 = pneg %p34
      %p201 = pneg %p58
      %p202 = pneg %p55
      %p203 = pneg %p79
      %p204 = pneg %p76
      %p205 = pneg %p100
      %p206 = pneg %p97
      %p207 = pneg %p121
      %p208 = pneg %p118
      %p209 = pneg %p147
      %p210 = pneg %p144
      %s211 = smul.u32 2, %s16
      %p212 = scmp.lt.s32.totalorder %s211, 3
      %s213 = scalar_select %p212, %s211, 3
      %s214 = smul.addr %s213, 8
      %s215 = scalar_lea.vmem %s5, %s214
      %s216 = smul.u32 2, %s16
      %p217 = scmp.lt.s32.totalorder %s216, 3
      %s218 = scalar_select %p217, %s216, 3
      %s219 = smul.addr %s218, 4
      %s220 = scalar_lea.vmem %s0, %s219
      %s221 = smul.u32 2, %s16
      %s222 = smul.u32 2, %s16
      %p223 = scmp.lt.s32.totalorder %s222, 3
      %s224 = scalar_select %p223, %s222, 3
      %s225 = smul.addr %s224, 8
      %s226 = scalar_lea.vmem %s5, %s225
      %s227 = smul.u32 2, %s16
      %v229 = vld [vmem:[%s220] sm:$0xf]
      %v230 = vld [vmem:[%s220 + $0x4] sm:$0xf]
      %v231 = vld [vmem:[%s1] sm:$0x3]
      %v232 = vld [vmem:[%s2] sm:$0x1]
      %v234 = vlaneseq
      %v235 = vshrl.u32 %v234, 7
      %v236 = vsub.s32 0, %v235
      %v237 = vrot.slane %v232, %v236
      %v241 = vunpack.c.l.b16 %v229
      %v242 = vunpack.c.l.b16 %v230
      %v243 = vpack.c.b16 %v242, %v241
      %vm244 = vcmask 31744
      %v246 = vsel %vm244, %v243, 0
      %vm248 = vcmask 1041408
      %v250 = vsel %vm248, %v231, 0
      %252 = vmatprep.subr.bf16.mxu0 0
      %253 = vmatpush1.bf16.msra.mxu0 %v250
      %254 = vmatprep.subr.bf16.mxu0 0
      %255 = vmatpush1.bf16.msra.mxu0 0
      %256 = vmatprep.subr.bf16.mxu0 0
      %257 = vmatpush1.bf16.msra.mxu0 0
      %258 = vmatprep.subr.bf16.mxu0 0
      %259 = vmatpush1.bf16.msra.mxu0 0
      %260 = vmatprep.subr.bf16.mxu0 0
      %261 = vmatpush1.bf16.msra.mxu0 0
      %262 = vmatprep.subr.bf16.mxu0 0
      %263 = vmatpush1.bf16.msra.mxu0 0
      %264 = vmatprep.subr.bf16.mxu0 0
      %265 = vmatpush1.bf16.msra.mxu0 0
      %266 = vmatprep.subr.bf16.mxu0 0
      %267 = vmatpush1.bf16.msra.mxu0 0
      %268 = vmatprep.subr.bf16.mxu0 0
      %269 = vmatpush1.bf16.msra.mxu0 0
      %270 = vmatprep.subr.bf16.mxu0 0
      %271 = vmatpush1.bf16.msra.mxu0 0
      %272 = vmatprep.subr.bf16.mxu0 0
      %273 = vmatpush1.bf16.msra.mxu0 0
      %274 = vmatprep.subr.bf16.mxu0 0
      %275 = vmatpush1.bf16.msra.mxu0 0
      %276 = vmatprep.subr.bf16.mxu0 0
      %277 = vmatpush1.bf16.msra.mxu0 0
      %278 = vmatprep.subr.bf16.mxu0 0
      %279 = vmatpush1.bf16.msra.mxu0 0
      %280 = vmatprep.subr.bf16.mxu0 0
      %281 = vmatpush1.bf16.msra.mxu0 0
      %282 = vmatprep.subr.bf16.mxu0 0
      %283 = vmatpush1.bf16.msra.mxu0 0
      %284 = vmatprep.mubr.bf16.mxu0 0
      %285 = vmatmul.mubr.bf16.gmra.mrb[0].mxu0 %v246
      %v286 = vpop.f32.mrb[0].mxu0
      %v287 = vadd.f32 %v237, %v286
      %v288 = vpop.f32.mrb[0].mxu0
      %v289 = vpop.f32.mrb[0].mxu0
      %v290 = vadd.f32 %v237, %v289
      %v291 = vpop.f32.mrb[0].mxu0
      %292 = vdwg.mxu0
      %vm293 = vcmask 261120
      %v294 = vsel %vm293, %v287, 0.0
      %295 = vadd.xlane.f32.xlu0 %v294
      %v296 = vpop.xlane.xlu0 %295
      %v297 = vsel %vm293, %v290, 0.0
      %298 = vadd.xlane.f32.xlu0 %v297
      %v299 = vpop.xlane.xlu0 %298
      %v300 = vmul.f32 %v296, 0.03125
      %v301 = vmul.f32 %v299, 0.03125
      %v302 = vmul.f32 %v287, %v287
      %v303 = vmul.f32 %v290, %v290
      %v304 = vsel %vm293, %v302, 0.0
      %305 = vadd.xlane.f32.xlu0 %v304
      %v306 = vpop.xlane.xlu0 %305
      %v307 = vsel %vm293, %v303, 0.0
      %308 = vadd.xlane.f32.xlu0 %v307
      %v309 = vpop.xlane.xlu0 %308
      %v310 = vmul.f32 %v306, 0.03125
      %v311 = vmul.f32 %v309, 0.03125
      %v312 = vmul.f32 %v300, %v300
      %v313 = vmul.f32 %v301, %v301
      %v314 = vsub.f32 %v310, %v312
      %v315 = vsub.f32 %v311, %v313
      %v316 = vmax.f32 %v314, 0.0
      %v317 = vmax.f32 %v315, 0.0
      %v318 = vsub.f32 %v287, %v300
      %v319 = vsub.f32 %v290, %v301
      %v320 = vadd.f32 %v316, 1e-05
      %v321 = vadd.f32 %v317, 1e-05
      %v322 = vrsqrt.pop %v320
      %v323 = vrsqrt.pop %v321
      %v324 = vmul.f32 %v318, %v322
      %v325 = vmul.f32 %v319, %v323
      %v326 = vld [vmem:[%s3] sm:$0x1]
      %v328 = vlaneseq
      %v329 = vshrl.u32 %v328, 7
      %v330 = vsub.s32 0, %v329
      %v331 = vrot.slane %v326, %v330
      %v333 = vmul.f32 %v324, %v331
      %v334 = vmul.f32 %v325, %v331
      %v335 = vld [vmem:[%s4] sm:$0x1]
      %v337 = vlaneseq
      %v338 = vshrl.u32 %v337, 7
      %v339 = vsub.s32 0, %v338
      %v340 = vrot.slane %v335, %v339
      %v342 = vadd.f32 %v333, %v340
      %v343 = vadd.f32 %v334, %v340
      %v344 = vmul.f32 %v342, 0.5
      %v345 = vmul.f32 %v343, 0.5
      %v346 = vmul.f32 %v342, 0.70710677
      %v347 = vmul.f32 %v343, 0.70710677
      %v348 = verf.f32.pop %v346
      %v349 = verf.f32.pop %v347
      %v350 = vadd.f32 %v348, 1.0
      %v351 = vadd.f32 %v349, 1.0
      %v352 = vmul.f32 %v344, %v350
      %v353 = vmul.f32 %v345, %v351
      %354 = vst.msk [vmem:[%s226] sm:$0xff] %vm293, %v352
      %355 = vst.msk [vmem:[%s226 + $0x8] sm:$0xff] %vm293, %v353
      %s356 = smul.u32 2, %s16
      %p357 = scmp.lt.s32.totalorder %s356, 3
      %s358 = scalar_select %p357, %s356, 3
      %s359 = smul.addr %s358, 8
      %s360 = scalar_lea.vmem %s5, %s359
      // Predicated region
      $region41: #{fcu_down.1} parent=39 // pred_check
        %p361 = pneg %p144
      $region42: #{fcu_down.1} parent=39 // pred_check_branch
        %363 = sbr.rel (%p361) target = $region44
      $region43: #{fcu_down.1} parent=39 // pred_region
        %s364 = smul.u32 2, %s16
      $region44: #{fcu_down.1} parent=39 // pred_fallthru
        _
    $region40: #{fcu_down.1} parent=5 // pred_fallthru
      _
    %p365 = scmp.le.s32.totalorder 2, %s11
    // Predicated region
    $region45: #{fcu_down.1} parent=5 // pred_check
      %p366 = pneg %p365
    $region46: #{fcu_down.1} parent=5 // pred_check_branch
      %368 = sbr.rel (%p366) target = $region48
    $region47: #{fcu_down.1} parent=5 // pred_region
      %s369 = ssub.s32 %s11, 2
      // Predicated region
      $region49: #{fcu_down.1} parent=47 // pred_check
        %p370 = pneg %p150
      $region50: #{fcu_down.1} parent=47 // pred_check_branch
        %372 = sbr.rel (%p370) target = $region52
      $region51: #{fcu_down.1} parent=47 // pred_region
        %s373 = smul.u32 2, %s17
        %p374 = scmp.lt.s32.totalorder %s373, 3
        %s375 = scalar_select %p374, %s373, 3
        %s376 = smul.addr %s375, 8
        %s377 = scalar_lea.vmem %s5, %s376
      $region52: #{fcu_down.1} parent=47 // pred_fallthru
        _
    $region48: #{fcu_down.1} parent=5 // pred_fallthru
      _
  $region6: #{fcu_down.1} parent=0 // loop_footer
    %s15 = sadd.s32 1, %s11
  $region7: #{fcu_down.1} parent=0 // loop_footer_branch
    %10 = sbr.rel target = $region3
  $region8: #{fcu_down.1} parent=0 // loop_exit
    _

</llo_original>
